<compile_context>
chip_gen: v7x
topology: tpu7x:2x2x1
jax: 0.10.0
libtpu: 0.0.40
codegen_flags: <defaults>
</compile_context>

<pallas_src>
import jax
import jax.numpy as jnp
from jax.experimental import pallas as pl
from jax.experimental.pallas import tpu as pltpu

ROWS, COLS = 5, 10          # logical shape (matches torch.rand(5, 10))
PAD_ROWS, PAD_COLS = 8, 128  # one lane-dense (sublane, lane) vreg tile


def _add3_kernel(sharded_param_ref, param_ref, inp_ref, out_ref):
    # Three-way elementwise add on the VPU, single unmasked (8,128) tile.
    # out_ref aliases inp_ref's HBM buffer (input_output_aliases={2: 0}).
    out_ref[...] = inp_ref[...] + sharded_param_ref[...] + param_ref[...]


def _pad_to_tile(x):
    return jnp.pad(
        x.astype(jnp.float32),
        ((0, PAD_ROWS - ROWS), (0, PAD_COLS - COLS)),
    )


@jax.jit
def my_sharded_model_forward(sharded_param, param, inp):
    """Pallas equivalent of MyShardedModel.forward (non-sharded branch).

    Inputs are (5, 10) float32. They are padded to a single lane-dense
    (8, 128) slab, added in one whole-array VMEM kernel invocation (no grid),
    and the (5, 10) window is sliced back out.
    """
    assert sharded_param.shape == (ROWS, COLS)
    assert param.shape == (ROWS, COLS)
    assert inp.shape == (ROWS, COLS)

    sp = _pad_to_tile(sharded_param)
    p = _pad_to_tile(param)
    x = _pad_to_tile(inp)

    vmem_spec = pl.BlockSpec(memory_space=pltpu.MemorySpace.VMEM)
    out_padded = pl.pallas_call(
        _add3_kernel,
        out_shape=jax.ShapeDtypeStruct((PAD_ROWS, PAD_COLS), jnp.float32),
        in_specs=[vmem_spec, vmem_spec, vmem_spec],
        out_specs=vmem_spec,
        input_output_aliases={2: 0},  # reuse the padded-input HBM buffer
    )(sp, p, x)

    return out_padded[:ROWS, :COLS]


if __name__ == "__main__":
    key = jax.random.PRNGKey(0)
    k_param, k_sharded, k_input = jax.random.split(key, 3)

    # Deterministic "parameters" mirroring torch.rand(5, 10) in __init__.
    param = jax.random.uniform(k_param, (ROWS, COLS), dtype=jnp.float32)
    sharded_param = jax.random.uniform(k_sharded, (ROWS, COLS), dtype=jnp.float32)

    # Example input consistent with the forward's broadcasting (same shape).
    x = jax.random.uniform(k_input, (ROWS, COLS), dtype=jnp.float32)

    out = my_sharded_model_forward(sharded_param, param, x)
    out = jax.block_until_ready(out)

    # Reference check against plain JAX.
    ref = sharded_param + param + x
    assert out.shape == (ROWS, COLS)
    assert jnp.allclose(out, ref, atol=1e-6), "mismatch vs reference"

    print("KERNEL_OK")
</pallas_src>

<mosaic_0001>
module attributes {stable_mosaic.version = 11 : i64} {
  func.func @_add3_kernel(%arg0: memref<8x128xf32, #tpu.memory_space<vmem>>, %arg1: memref<8x128xf32, #tpu.memory_space<vmem>>, %arg2: memref<8x128xf32, #tpu.memory_space<vmem>>, %arg3: memref<8x128xf32, #tpu.memory_space<vmem>>) attributes {dimension_semantics = [], scalar_prefetch = 0 : i64, scratch_operands = 0 : i64, tpu.core_type = #tpu.core_type<tc>} {
    %c0 = arith.constant 0 : index
    %c0_0 = arith.constant 0 : index
    %0 = vector.load %arg2[%c0, %c0_0] : memref<8x128xf32, #tpu.memory_space<vmem>>, vector<8x128xf32>
    %c0_1 = arith.constant 0 : index
    %c0_2 = arith.constant 0 : index
    %1 = vector.load %arg0[%c0_1, %c0_2] : memref<8x128xf32, #tpu.memory_space<vmem>>, vector<8x128xf32>
    %2 = arith.addf %0, %1 : vector<8x128xf32>
    %c0_3 = arith.constant 0 : index
    %c0_4 = arith.constant 0 : index
    %3 = vector.load %arg1[%c0_3, %c0_4] : memref<8x128xf32, #tpu.memory_space<vmem>>, vector<8x128xf32>
    %4 = arith.addf %2, %3 : vector<8x128xf32>
    %c0_5 = arith.constant 0 : index
    %c0_6 = arith.constant 0 : index
    %5 = vector.load %arg3[%c0_5, %c0_6] : memref<8x128xf32, #tpu.memory_space<vmem>>, vector<8x128xf32>
    tpu.vector_store %arg3[%c0_5, %c0_6], %4 {strides = array<i32>} : memref<8x128xf32, #tpu.memory_space<vmem>>, vector<8x128xf32>,
    return
  }
}

</mosaic_0001>

<llo_original>
// kernel: my_sharded_model_forward.1
$region0: #{my_sharded_model_forward.1}
  #allocation0 [shape = 'u32[]', space=smem, size = 0x4, offset = 0x4, fixed_abs, tag = 'smem constant byte address 0x4 - core index']
  #allocation1 [shape = 'u32[144,128]{1,0:T(1,128)}', space=vmem, size = 0x12000, scoped, tag = 'internal scratch']
  %s0 = inlined_call_operand.vmem [shape: f32[8,128], index: 0, kind: input, shape index: {}]
  %s1 = inlined_call_operand.vmem [shape: f32[8,128], index: 1, kind: input, shape index: {}]
  %s2 = inlined_call_operand.vmem [shape: f32[8,128], index: 2, kind: input, shape index: {}, may-alias: {2,3}]
  %s3 = inlined_call_operand.vmem [shape: f32[8,128], index: 3, kind: output, shape index: {}, may-alias: {2,3}]
  %s4 = sld [smem:[#allocation0]]
  $region22: #{my_sharded_model_forward.1} parent=0
    _
  %s6 = ssub.s32 1, %s4
  %s7 = scalar_select 0, %s6, %s4
  // Predicated region
  $region2: #{my_sharded_model_forward.1} parent=0 // pred_check
    _
  $region3: #{my_sharded_model_forward.1} parent=0 // pred_check_branch
    %9 = sbr.rel (0) target = $region5
  $region4: #{my_sharded_model_forward.1} parent=0 // pred_region
    _
  $region5: #{my_sharded_model_forward.1} parent=0 // pred_fallthru
    _
  // Predicated region
  $region6: #{my_sharded_model_forward.1} parent=0 // pred_check
    _
  $region7: #{my_sharded_model_forward.1} parent=0 // pred_check_branch
    %11 = sbr.rel (0) target = $region9
  $region8: #{my_sharded_model_forward.1} parent=0 // pred_region
    _
  $region9: #{my_sharded_model_forward.1} parent=0 // pred_fallthru
    _
  // Predicated region
  $region10: #{my_sharded_model_forward.1} parent=0 // pred_check
    _
  $region11: #{my_sharded_model_forward.1} parent=0 // pred_check_branch
    %13 = sbr.rel (0) target = $region13
  $region12: #{my_sharded_model_forward.1} parent=0 // pred_region
    _
  $region13: #{my_sharded_model_forward.1} parent=0 // pred_fallthru
    _
  %v14 = vld [vmem:[%s2] sm:$0xff]
  %v15 = vld [vmem:[%s0] sm:$0xff]
  %v16 = vadd.f32 %v14, %v15
  %v17 = vld [vmem:[%s1] sm:$0xff]
  %v18 = vadd.f32 %v16, %v17
  %19 = vst [vmem:[%s3] sm:$0xff] %v18
  // Predicated region
  $region14: #{my_sharded_model_forward.1} parent=0 // pred_check
    _
  $region15: #{my_sharded_model_forward.1} parent=0 // pred_check_branch
    %21 = sbr.rel (0) target = $region17
  $region16: #{my_sharded_model_forward.1} parent=0 // pred_region
    _
  $region17: #{my_sharded_model_forward.1} parent=0 // pred_fallthru
    _
  // Predicated region
  $region18: #{my_sharded_model_forward.1} parent=0 // pred_check
    _
  $region19: #{my_sharded_model_forward.1} parent=0 // pred_check_branch
    %23 = sbr.rel (0) target = $region21
  $region20: #{my_sharded_model_forward.1} parent=0 // pred_region
    _
  $region21: #{my_sharded_model_forward.1} parent=0 // pred_fallthru
    _

</llo_original>
